<compile_context>
chip_gen: v7x
topology: tpu7x:2x2x1
jax: 0.10.0
libtpu: 0.0.40
codegen_flags: <defaults>
</compile_context>

<pallas_src>
import math

import jax
import jax.numpy as jnp
from jax.experimental import pallas as pl
from jax.experimental.pallas import tpu as pltpu


def _round_up(x, m):
    return ((x + m - 1) // m) * m


def _sigmoid_f32(x):
    # sigmoid(x) == 0.5 * tanh(x/2) + 0.5 ; tanh runs on the EUP (its own
    # VLIW slot), so the epilogue does not compete with MXU pop / store slots.
    return 0.5 * jnp.tanh(0.5 * x) + 0.5


def _vmem_capacity_bytes():
    try:
        return int(pltpu.get_tpu_info().vmem_capacity_bytes)
    except Exception:
        return 64 * 1024 * 1024  # v7x per-TensorCore size = min across generations


# ---------------------------------------------------------------------------
# Pallas kernels (dtype-agnostic: x / weights may be f32 or pre-cast bf16;
# accumulation and the sigmoid epilogue are always f32).
# ---------------------------------------------------------------------------
def _encoder_kernel(x_ref, we_ref, be_ref, o_ref):
    # x_ref: (bm, Kp)  we_ref: (Kp, Np)  be_ref: (1, Np)  o_ref: (bm, Np)
    acc = jnp.dot(x_ref[...], we_ref[...], preferred_element_type=jnp.float32)
    acc = acc + be_ref[...].astype(jnp.float32)
    o_ref[...] = _sigmoid_f32(acc).astype(o_ref.dtype)


def _fused_autoencoder_kernel(x_ref, we_ref, be_ref, wd_ref, bd_ref, o_ref):
    # Fused encoder->decoder: the hidden activation h never leaves VMEM/vregs.
    # x_ref: (bm, Kp)  we_ref: (Kp, Np)  be_ref: (1, Np)
    # wd_ref: (Np, Kp) bd_ref: (1, Kp)   o_ref: (bm, Kp)
    h = jnp.dot(x_ref[...], we_ref[...], preferred_element_type=jnp.float32)
    h = _sigmoid_f32(h + be_ref[...].astype(jnp.float32))
    out = jnp.dot(h.astype(wd_ref.dtype), wd_ref[...],
                  preferred_element_type=jnp.float32)
    out = _sigmoid_f32(out + bd_ref[...].astype(jnp.float32))
    o_ref[...] = out.astype(o_ref.dtype)


# ---------------------------------------------------------------------------
# AutoEncoderLayer wrapper.  Parameters initialised like nn.Linear:
# U(-1/sqrt(fan_in), +1/sqrt(fan_in)); weights stored as (in, out).
# ---------------------------------------------------------------------------
class AutoEncoderLayer:
    def __init__(self, input_dim, output_dim, self_training=False, *, key,
                 block_m=256, use_bf16=False):
        self.in_features = input_dim
        self.out_features = output_dim
        self.is_training_self = self_training
        self.block_m = block_m
        self.use_bf16 = use_bf16

        k_ew, k_eb, k_dw, k_db = jax.random.split(key, 4)
        enc_bound = 1.0 / math.sqrt(input_dim)
        dec_bound = 1.0 / math.sqrt(output_dim)

        # Unpadded f32 master parameters (also used by the pure-JAX reference).
        self.w_enc = jax.random.uniform(
            k_ew, (input_dim, output_dim), jnp.float32, -enc_bound, enc_bound)
        self.b_enc = jax.random.uniform(
            k_eb, (output_dim,), jnp.float32, -enc_bound, enc_bound)
        self.w_dec = jax.random.uniform(
            k_dw, (output_dim, input_dim), jnp.float32, -dec_bound, dec_bound)
        self.b_dec = jax.random.uniform(
            k_db, (input_dim,), jnp.float32, -dec_bound, dec_bound)

        # Lane-dense padded (and, if use_bf16, pre-cast) kernel-side copies.
        # Zero padding keeps semantics exact: padded hidden columns
        # (sigmoid(0)=0.5) multiply all-zero decoder rows.  If a trainer
        # updates these in place, the pad rows/cols must be re-zeroed.
        self.Kp = _round_up(input_dim, 128)
        self.Np = _round_up(output_dim, 128)
        w_dtype = jnp.bfloat16 if use_bf16 else jnp.float32
        self.w_enc_p = jnp.pad(
            self.w_enc,
            ((0, self.Kp - input_dim), (0, self.Np - output_dim))).astype(w_dtype)
        self.b_enc_p = jnp.pad(
            self.b_enc, (0, self.Np - output_dim)).reshape(1, self.Np)
        self.w_dec_p = jnp.pad(
            self.w_dec,
            ((0, self.Np - output_dim), (0, self.Kp - input_dim))).astype(w_dtype)
        self.b_dec_p = jnp.pad(
            self.b_dec, (0, self.Kp - input_dim)).reshape(1, self.Kp)

    # ------------------------------------------------------------------
    def __call__(self, x):
        try:
            return self._forward(x, single_buffer_weights=True)
        except Exception:
            # Robustness fallback: if this jax build rejects pl.Buffered(1)
            # on the top-level pallas_call pipeline, rerun with default
            # (double) buffering -- costs only 2x weight VMEM.
            return self._forward(x, single_buffer_weights=False)

    def _forward(self, x, *, single_buffer_weights):
        M, K = x.shape
        assert K == self.in_features
        Kp, Np = self.Kp, self.Np

        # ---- batch tiling ------------------------------------------------
        # bm: multiple of 8 (sublane constraint), large enough to feed the
        # MXU and amortise the ~0.35us/grid-step overhead, but capped so the
        # "parallel" batch grid has >= 2 steps whenever M >= 16 so both v7x
        # TensorCores get work.
        bm = min(_round_up(self.block_m, 8), _round_up(M, 8))
        if M >= 16 and pl.cdiv(M, bm) < 2:
            bm = _round_up(pl.cdiv(M, 2), 8)
        grid = (pl.cdiv(M, bm),)

        # ---- input layout --------------------------------------------------
        # Pad only the feature (lane) dim.  The batch dim is handled by the
        # partial edge block: garbage edge rows never influence valid rows
        # (row-wise compute) and out-of-range stores are masked by Pallas.
        x_in = x if K == Kp else jnp.pad(x, ((0, 0), (0, Kp - K)))
        if self.use_bf16:
            x_in = x_in.astype(jnp.bfloat16)

        out_cols = Kp if self.is_training_self else Np
        out_dtype = x.dtype

        # ---- explicit VMEM budget -------------------------------------------
        w_itemsize = self.w_enc_p.dtype.itemsize
        x_itemsize = x_in.dtype.itemsize
        o_itemsize = out_dtype.itemsize
        n_wbuf = 1 if single_buffer_weights else 2
        n_mats = 2 if self.is_training_self else 1
        bias_elems = Np + (Kp if self.is_training_self else 0)
        resident = n_wbuf * (n_mats * Kp * Np * w_itemsize + bias_elems * 4)
        tiles = 2 * bm * Kp * x_itemsize + 2 * bm * out_cols * o_itemsize
        vmem_need = resident + tiles + (4 << 20)          # + compiler scratch margin
        vmem_limit = int(min(max(vmem_need, 32 << 20), 0.9 * _vmem_capacity_bytes()))
        # NOTE: for feature dims so large that `resident` alone exceeds the cap
        # (~1.5-2k f32 on v7x) a Kp/Np-tiled accumulator kernel would be needed;
        # typical stacked-autoencoder layers are far below that, and
        # use_bf16=True halves the footprint.

        # ---- cost hint for the XLA scheduler --------------------------------
        flops = 2 * M * Kp * Np * n_mats
        transcendentals = M * (Np + (Kp if self.is_training_self else 0))
        bytes_accessed = (x_in.size * x_itemsize
                          + n_mats * Kp * Np * w_itemsize
                          + bias_elems * 4
                          + M * out_cols * o_itemsize)
        cost = pl.CostEstimate(flops=int(flops),
                               transcendentals=int(transcendentals),
                               bytes_accessed=int(bytes_accessed))
        compiler_params = pltpu.CompilerParams(
            dimension_semantics=("parallel",),
            vmem_limit_bytes=vmem_limit,
        )

        # Constant-index (VMEM-resident) weight/bias blocks: single-buffer.
        weight_mode = pl.Buffered(1) if single_buffer_weights else None

        if self.is_training_self:
            out = pl.pallas_call(
                _fused_autoencoder_kernel,
                out_shape=jax.ShapeDtypeStruct((M, Kp), out_dtype),
                grid_spec=pltpu.PrefetchScalarGridSpec(
                    num_scalar_prefetch=0,
                    grid=grid,
                    in_specs=[
                        pl.BlockSpec((bm, Kp), lambda i: (i, 0)),        # x tile
                        pl.BlockSpec((Kp, Np), lambda i: (0, 0),
                                     pipeline_mode=weight_mode),         # W_enc (resident)
                        pl.BlockSpec((1, Np), lambda i: (0, 0),
                                     pipeline_mode=weight_mode),         # b_enc
                        pl.BlockSpec((Np, Kp), lambda i: (0, 0),
                                     pipeline_mode=weight_mode),         # W_dec (resident)
                        pl.BlockSpec((1, Kp), lambda i: (0, 0),
                                     pipeline_mode=weight_mode),         # b_dec
                    ],
                    out_specs=pl.BlockSpec((bm, Kp), lambda i: (i, 0)),
                ),
                compiler_params=compiler_params,
                cost_estimate=cost,
            )(x_in, self.w_enc_p, self.b_enc_p, self.w_dec_p, self.b_dec_p)
            return out if K == Kp else out[:, :K]

        out = pl.pallas_call(
            _encoder_kernel,
            out_shape=jax.ShapeDtypeStruct((M, Np), out_dtype),
            grid_spec=pltpu.PrefetchScalarGridSpec(
                num_scalar_prefetch=0,
                grid=grid,
                in_specs=[
                    pl.BlockSpec((bm, Kp), lambda i: (i, 0)),            # x tile
                    pl.BlockSpec((Kp, Np), lambda i: (0, 0),
                                 pipeline_mode=weight_mode),             # W_enc (resident)
                    pl.BlockSpec((1, Np), lambda i: (0, 0),
                                 pipeline_mode=weight_mode),             # b_enc
                ],
                out_specs=pl.BlockSpec((bm, Np), lambda i: (i, 0)),
            ),
            compiler_params=compiler_params,
            cost_estimate=cost,
        )(x_in, self.w_enc_p, self.b_enc_p)
        return out if self.out_features == Np else out[:, :self.out_features]

    # TODO(synk): lock_grad / acquire_grad are autograd bookkeeping only --
    # there is no forward-pass equivalent to implement in a Pallas kernel.


# ---------------------------------------------------------------------------
# Reference (plain JAX) for the correctness check
# ---------------------------------------------------------------------------
def _ref_forward(layer, x):
    h = jax.nn.sigmoid(x @ layer.w_enc + layer.b_enc)
    if layer.is_training_self:
        return jax.nn.sigmoid(h @ layer.w_dec + layer.b_dec)
    return h


if __name__ == "__main__":
    key = jax.random.PRNGKey(0)
    k_x, k_params = jax.random.split(key)

    # Odd sizes on purpose: exercise the lane-dense feature padding
    # (100 -> 128, 48 -> 128) and the >=2-step parallel batch grid.
    batch, input_dim, output_dim = 16, 100, 48
    x = jax.random.normal(k_x, (batch, input_dim), jnp.float32)

    # SelfTraining=True -> single fused encoder+decoder kernel (f32).
    layer_self = AutoEncoderLayer(input_dim, output_dim,
                                  self_training=True, key=k_params)
    recon = jax.block_until_ready(layer_self(x))
    assert recon.shape == (batch, input_dim)

    # SelfTraining=False -> encoder-only kernel (f32).
    layer_feat = AutoEncoderLayer(input_dim, output_dim,
                                  self_training=False, key=k_params)
    feats = jax.block_until_ready(layer_feat(x))
    assert feats.shape == (batch, output_dim)

    # Numerical check against the pure-JAX reference.
    ref_recon = _ref_forward(layer_self, x)
    ref_feats = _ref_forward(layer_feat, x)
    assert jnp.allclose(recon, ref_recon, atol=1e-5, rtol=1e-5), \
        float(jnp.max(jnp.abs(recon - ref_recon)))
    assert jnp.allclose(feats, ref_feats, atol=1e-5, rtol=1e-5), \
        float(jnp.max(jnp.abs(feats - ref_feats)))

    # bf16 MXU mode (v6e/v7x throughput path): weights pre-cast in the
    # wrapper; looser tolerance by design.
    layer_bf16 = AutoEncoderLayer(input_dim, output_dim,
                                  self_training=True, key=k_params,
                                  use_bf16=True)
    recon_bf16 = jax.block_until_ready(layer_bf16(x))
    assert recon_bf16.shape == (batch, input_dim)
    assert jnp.allclose(recon_bf16, ref_recon, atol=3e-2, rtol=3e-2), \
        float(jnp.max(jnp.abs(recon_bf16 - ref_recon)))

    print("KERNEL_OK")
</pallas_src>

<mosaic_0001>
module attributes {stable_mosaic.version = 11 : i64} {
  func.func @_fused_autoencoder_kernel(%arg0: i32, %arg1: memref<8x128xf32, #tpu.memory_space<vmem>>, %arg2: memref<128x128xf32, #tpu.memory_space<vmem>>, %arg3: memref<1x128xf32, #tpu.memory_space<vmem>>, %arg4: memref<128x128xf32, #tpu.memory_space<vmem>>, %arg5: memref<1x128xf32, #tpu.memory_space<vmem>>, %arg6: memref<8x128xf32, #tpu.memory_space<vmem>>) attributes {dimension_semantics = [#tpu.dimension_semantics<parallel>], iteration_bounds = array<i64: 2>, scalar_prefetch = 0 : i64, scratch_operands = 0 : i64, tpu.core_type = #tpu.core_type<tc>, window_params = [{transform_indices = @transform_0, window_bounds = array<i64: 8, 128>}, {pipeline_mode = #tpu.pipeline_mode<synchronous>, transform_indices = @transform_1, window_bounds = array<i64: 128, 128>}, {pipeline_mode = #tpu.pipeline_mode<synchronous>, transform_indices = @transform_2, window_bounds = array<i64: 1, 128>}, {pipeline_mode = #tpu.pipeline_mode<synchronous>, transform_indices = @transform_3, window_bounds = array<i64: 128, 128>}, {pipeline_mode = #tpu.pipeline_mode<synchronous>, transform_indices = @transform_4, window_bounds = array<i64: 1, 128>}, {transform_indices = @transform_5, window_bounds = array<i64: 8, 128>}]} {
    %c0 = arith.constant 0 : index
    %c0_0 = arith.constant 0 : index
    %0 = vector.load %arg1[%c0, %c0_0] : memref<8x128xf32, #tpu.memory_space<vmem>>, vector<8x128xf32>
    %c0_1 = arith.constant 0 : index
    %c0_2 = arith.constant 0 : index
    %1 = vector.load %arg2[%c0_1, %c0_2] : memref<128x128xf32, #tpu.memory_space<vmem>>, vector<128x128xf32>
    %cst = arith.constant dense<0.000000e+00> : vector<8x128xf32>
    %2 = tpu.matmul %0, %1, %cst {dimension_numbers = #tpu.dot_dimension_numbers<[1], [0], [0], [1], [0, 0, 1, 1], [], []>} : vector<8x128xf32>, vector<128x128xf32>, vector<8x128xf32> -> vector<8x128xf32>
    %c0_3 = arith.constant 0 : index
    %c0_4 = arith.constant 0 : index
    %3 = vector.load %arg3[%c0_3, %c0_4] : memref<1x128xf32, #tpu.memory_space<vmem>>, vector<1x128xf32>
    %4 = vector.broadcast %3 : vector<1x128xf32> to vector<8x128xf32>
    %5 = arith.addf %2, %4 : vector<8x128xf32>
    %cst_5 = arith.constant 5.000000e-01 : f32
    %6 = vector.broadcast %cst_5 : f32 to vector<8x128xf32>
    %7 = arith.mulf %6, %5 : vector<8x128xf32>
    %8 = math.tanh %7 : vector<8x128xf32>
    %cst_6 = arith.constant 5.000000e-01 : f32
    %9 = vector.broadcast %cst_6 : f32 to vector<8x128xf32>
    %10 = arith.mulf %9, %8 : vector<8x128xf32>
    %cst_7 = arith.constant 5.000000e-01 : f32
    %11 = vector.broadcast %cst_7 : f32 to vector<8x128xf32>
    %12 = arith.addf %10, %11 : vector<8x128xf32>
    %c0_8 = arith.constant 0 : index
    %c0_9 = arith.constant 0 : index
    %13 = vector.load %arg4[%c0_8, %c0_9] : memref<128x128xf32, #tpu.memory_space<vmem>>, vector<128x128xf32>
    %cst_10 = arith.constant dense<0.000000e+00> : vector<8x128xf32>
    %14 = tpu.matmul %12, %13, %cst_10 {dimension_numbers = #tpu.dot_dimension_numbers<[1], [0], [0], [1], [0, 0, 1, 1], [], []>} : vector<8x128xf32>, vector<128x128xf32>, vector<8x128xf32> -> vector<8x128xf32>
    %c0_11 = arith.constant 0 : index
    %c0_12 = arith.constant 0 : index
    %15 = vector.load %arg5[%c0_11, %c0_12] : memref<1x128xf32, #tpu.memory_space<vmem>>, vector<1x128xf32>
    %16 = vector.broadcast %15 : vector<1x128xf32> to vector<8x128xf32>
    %17 = arith.addf %14, %16 : vector<8x128xf32>
    %cst_13 = arith.constant 5.000000e-01 : f32
    %18 = vector.broadcast %cst_13 : f32 to vector<8x128xf32>
    %19 = arith.mulf %18, %17 : vector<8x128xf32>
    %20 = math.tanh %19 : vector<8x128xf32>
    %cst_14 = arith.constant 5.000000e-01 : f32
    %21 = vector.broadcast %cst_14 : f32 to vector<8x128xf32>
    %22 = arith.mulf %21, %20 : vector<8x128xf32>
    %cst_15 = arith.constant 5.000000e-01 : f32
    %23 = vector.broadcast %cst_15 : f32 to vector<8x128xf32>
    %24 = arith.addf %22, %23 : vector<8x128xf32>
    %c0_16 = arith.constant 0 : index
    %c0_17 = arith.constant 0 : index
    %25 = vector.load %arg6[%c0_16, %c0_17] : memref<8x128xf32, #tpu.memory_space<vmem>>, vector<8x128xf32>
    tpu.vector_store %arg6[%c0_16, %c0_17], %24 {strides = array<i32>} : memref<8x128xf32, #tpu.memory_space<vmem>>, vector<8x128xf32>,
    return
  }
  func.func @transform_0(%arg0: i32) -> (i32, i32) {
    %c0_i32 = arith.constant 0 : i32
    %c0_i32_0 = arith.constant 0 : i32
    return %arg0, %c0_i32 : i32, i32
  }
  func.func @transform_1(%arg0: i32) -> (i32, i32) {
    %c0_i32 = arith.constant 0 : i32
    %c0_i32_0 = arith.constant 0 : i32
    %c0_i32_1 = arith.constant 0 : i32
    return %c0_i32, %c0_i32_0 : i32, i32
  }
  func.func @transform_2(%arg0: i32) -> (i32, i32) {
    %c0_i32 = arith.constant 0 : i32
    %c0_i32_0 = arith.constant 0 : i32
    %c0_i32_1 = arith.constant 0 : i32
    return %c0_i32, %c0_i32_0 : i32, i32
  }
  func.func @transform_3(%arg0: i32) -> (i32, i32) {
    %c0_i32 = arith.constant 0 : i32
    %c0_i32_0 = arith.constant 0 : i32
    %c0_i32_1 = arith.constant 0 : i32
    return %c0_i32, %c0_i32_0 : i32, i32
  }
  func.func @transform_4(%arg0: i32) -> (i32, i32) {
    %c0_i32 = arith.constant 0 : i32
    %c0_i32_0 = arith.constant 0 : i32
    %c0_i32_1 = arith.constant 0 : i32
    return %c0_i32, %c0_i32_0 : i32, i32
  }
  func.func @transform_5(%arg0: i32) -> (i32, i32) {
    %c0_i32 = arith.constant 0 : i32
    %c0_i32_0 = arith.constant 0 : i32
    return %arg0, %c0_i32 : i32, i32
  }
}

module attributes {stable_mosaic.version = 11 : i64} {
  func.func @_fused_autoencoder_kernel(%arg0: i32, %arg1: memref<8x128xf32, #tpu.memory_space<vmem>>, %arg2: memref<128x128xf32, #tpu.memory_space<vmem>>, %arg3: memref<1x128xf32, #tpu.memory_space<vmem>>, %arg4: memref<128x128xf32, #tpu.memory_space<vmem>>, %arg5: memref<1x128xf32, #tpu.memory_space<vmem>>, %arg6: memref<8x128xf32, #tpu.memory_space<vmem>>) attributes {dimension_semantics = [#tpu.dimension_semantics<parallel>], iteration_bounds = array<i64: 2>, scalar_prefetch = 0 : i64, scratch_operands = 0 : i64, tpu.core_type = #tpu.core_type<tc>, window_params = [{transform_indices = @transform_0, window_bounds = array<i64: 8, 128>}, {pipeline_mode = #tpu.pipeline_mode<synchronous>, transform_indices = @transform_1, window_bounds = array<i64: 128, 128>}, {pipeline_mode = #tpu.pipeline_mode<synchronous>, transform_indices = @transform_2, window_bounds = array<i64: 1, 128>}, {pipeline_mode = #tpu.pipeline_mode<synchronous>, transform_indices = @transform_3, window_bounds = array<i64: 128, 128>}, {pipeline_mode = #tpu.pipeline_mode<synchronous>, transform_indices = @transform_4, window_bounds = array<i64: 1, 128>}, {transform_indices = @transform_5, window_bounds = array<i64: 8, 128>}]} {
    %c0 = arith.constant 0 : index
    %c0_0 = arith.constant 0 : index
    %0 = vector.load %arg1[%c0, %c0_0] : memref<8x128xf32, #tpu.memory_space<vmem>>, vector<8x128xf32>
    %c0_1 = arith.constant 0 : index
    %c0_2 = arith.constant 0 : index
    %1 = vector.load %arg2[%c0_1, %c0_2] : memref<128x128xf32, #tpu.memory_space<vmem>>, vector<128x128xf32>
    %cst = arith.constant dense<0.000000e+00> : vector<8x128xf32>
    %2 = tpu.matmul %0, %1, %cst {dimension_numbers = #tpu.dot_dimension_numbers<[1], [0], [0], [1], [0, 0, 1, 1], [], []>} : vector<8x128xf32>, vector<128x128xf32>, vector<8x128xf32> -> vector<8x128xf32>
    %c0_3 = arith.constant 0 : index
    %c0_4 = arith.constant 0 : index
    %3 = vector.load %arg3[%c0_3, %c0_4] : memref<1x128xf32, #tpu.memory_space<vmem>>, vector<1x128xf32>
    %4 = vector.broadcast %3 : vector<1x128xf32> to vector<8x128xf32>
    %5 = arith.addf %2, %4 : vector<8x128xf32>
    %cst_5 = arith.constant 5.000000e-01 : f32
    %6 = vector.broadcast %cst_5 : f32 to vector<8x128xf32>
    %7 = arith.mulf %6, %5 : vector<8x128xf32>
    %8 = math.tanh %7 : vector<8x128xf32>
    %cst_6 = arith.constant 5.000000e-01 : f32
    %9 = vector.broadcast %cst_6 : f32 to vector<8x128xf32>
    %10 = arith.mulf %9, %8 : vector<8x128xf32>
    %cst_7 = arith.constant 5.000000e-01 : f32
    %11 = vector.broadcast %cst_7 : f32 to vector<8x128xf32>
    %12 = arith.addf %10, %11 : vector<8x128xf32>
    %c0_8 = arith.constant 0 : index
    %c0_9 = arith.constant 0 : index
    %13 = vector.load %arg4[%c0_8, %c0_9] : memref<128x128xf32, #tpu.memory_space<vmem>>, vector<128x128xf32>
    %cst_10 = arith.constant dense<0.000000e+00> : vector<8x128xf32>
    %14 = tpu.matmul %12, %13, %cst_10 {dimension_numbers = #tpu.dot_dimension_numbers<[1], [0], [0], [1], [0, 0, 1, 1], [], []>} : vector<8x128xf32>, vector<128x128xf32>, vector<8x128xf32> -> vector<8x128xf32>
    %c0_11 = arith.constant 0 : index
    %c0_12 = arith.constant 0 : index
    %15 = vector.load %arg5[%c0_11, %c0_12] : memref<1x128xf32, #tpu.memory_space<vmem>>, vector<1x128xf32>
    %16 = vector.broadcast %15 : vector<1x128xf32> to vector<8x128xf32>
    %17 = arith.addf %14, %16 : vector<8x128xf32>
    %cst_13 = arith.constant 5.000000e-01 : f32
    %18 = vector.broadcast %cst_13 : f32 to vector<8x128xf32>
    %19 = arith.mulf %18, %17 : vector<8x128xf32>
    %20 = math.tanh %19 : vector<8x128xf32>
    %cst_14 = arith.constant 5.000000e-01 : f32
    %21 = vector.broadcast %cst_14 : f32 to vector<8x128xf32>
    %22 = arith.mulf %21, %20 : vector<8x128xf32>
    %cst_15 = arith.constant 5.000000e-01 : f32
    %23 = vector.broadcast %cst_15 : f32 to vector<8x128xf32>
    %24 = arith.addf %22, %23 : vector<8x128xf32>
    %c0_16 = arith.constant 0 : index
    %c0_17 = arith.constant 0 : index
    %25 = vector.load %arg6[%c0_16, %c0_17] : memref<8x128xf32, #tpu.memory_space<vmem>>, vector<8x128xf32>
    tpu.vector_store %arg6[%c0_16, %c0_17], %24 {strides = array<i32>} : memref<8x128xf32, #tpu.memory_space<vmem>>, vector<8x128xf32>,
    return
  }
  func.func @transform_0(%arg0: i32) -> (i32, i32) {
    %c0_i32 = arith.constant 0 : i32
    %c0_i32_0 = arith.constant 0 : i32
    return %arg0, %c0_i32 : i32, i32
  }
  func.func @transform_1(%arg0: i32) -> (i32, i32) {
    %c0_i32 = arith.constant 0 : i32
    %c0_i32_0 = arith.constant 0 : i32
    %c0_i32_1 = arith.constant 0 : i32
    return %c0_i32, %c0_i32_0 : i32, i32
  }
  func.func @transform_2(%arg0: i32) -> (i32, i32) {
    %c0_i32 = arith.constant 0 : i32
    %c0_i32_0 = arith.constant 0 : i32
    %c0_i32_1 = arith.constant 0 : i32
    return %c0_i32, %c0_i32_0 : i32, i32
  }
  func.func @transform_3(%arg0: i32) -> (i32, i32) {
    %c0_i32 = arith.constant 0 : i32
    %c0_i32_0 = arith.constant 0 : i32
    %c0_i32_1 = arith.constant 0 : i32
    return %c0_i32, %c0_i32_0 : i32, i32
  }
  func.func @transform_4(%arg0: i32) -> (i32, i32) {
    %c0_i32 = arith.constant 0 : i32
    %c0_i32_0 = arith.constant 0 : i32
    %c0_i32_1 = arith.constant 0 : i32
    return %c0_i32, %c0_i32_0 : i32, i32
  }
  func.func @transform_5(%arg0: i32) -> (i32, i32) {
    %c0_i32 = arith.constant 0 : i32
    %c0_i32_0 = arith.constant 0 : i32
    return %arg0, %c0_i32 : i32, i32
  }
}

</mosaic_0001>

<llo_original>
// kernel: tpu_custom_call.1
$region0: #{tpu_custom_call.1}
  #allocation0 [shape = 'u32[]', space=smem, size = 0x4, offset = 0x4, fixed_abs, tag = 'smem constant byte address 0x4 - core index']
  #allocation1 [shape = 'u32[144,128]{1,0:T(1,128)}', space=vmem, size = 0x12000, scoped, tag = 'internal scratch']
  %s0 = inlined_call_operand.hbm [shape: f32[16,128], index: 0, kind: input, shape index: {}]
  %s1 = inlined_call_operand.hbm [shape: f32[128,128], index: 1, kind: input, shape index: {}]
  %s2 = inlined_call_operand.vmem [shape: f32[1,128], index: 2, kind: input, shape index: {}]
  %s3 = inlined_call_operand.hbm [shape: f32[128,128], index: 3, kind: input, shape index: {}]
  %s4 = inlined_call_operand.vmem [shape: f32[1,128], index: 4, kind: input, shape index: {}]
  %s5 = inlined_call_operand.hbm [shape: f32[16,128], index: 5, kind: output, shape index: {}]
  %s6 = sld [smem:[#allocation0]]
  $region65: #{tpu_custom_call.1} parent=0
    _
  %s8 = ssub.s32 1, %s6
  %s9 = scalar_select 0, %s8, %s6
  $region1: #{tpu_custom_call.1} parent=0
    #allocation2 [shape = 'u8[8192]{0}', space=vmem, size = 0x2000, scoped, tag = 'input window, operand 0']
    #allocation3 [shape = 's32[2]{0}', space=sflag, size = 0x8, scoped, tag = 'scoped memory for tpu_custom_call.1']
    #allocation4 [shape = 's32[2]{0}', space=sflag, size = 0x8, scoped, tag = 'scoped memory for tpu_custom_call.1']
    #allocation5 [shape = 'u8[65536]{0}', space=vmem, size = 0x10000, scoped, tag = 'input window, operand 1, single buffered']
    #allocation6 [shape = 's32[1]{0}', space=sflag, size = 0x4, scoped, tag = 'scoped memory for tpu_custom_call.1']
    #allocation7 [shape = 'u8[65536]{0}', space=vmem, size = 0x10000, scoped, tag = 'input window, operand 3, single buffered']
    #allocation8 [shape = 'u8[8192]{0}', space=vmem, size = 0x2000, scoped, tag = 'output window, operand 0']
    %10 = vsyncpa [#allocation3], 0
    %s11 = scalar_lea.sflag [#allocation3], 1
    %12 = vsyncpa %s11, 0
    %13 = vsyncpa [#allocation6], 0
    %14 = vsyncpa [#allocation4], 0
    %s15 = scalar_lea.sflag [#allocation4], 1
    %16 = vsyncpa %s15, 0
    loop: start=0, step=1, limit=4
    $region2: #{tpu_custom_call.1} parent=1 // loop_pre_header
      _
    $region3: #{tpu_custom_call.1} parent=1 // loop_header
      %s18 = sphi 0, %s22
      %p19 = scmp.ge.s32.totalorder %s18, 4
      %s28 = sphi 0, %s30
      %s31 = sphi 0, %s28
      %s32 = sphi 0, %s31
      %s48 = sphi 0, %s32
      %s52 = sphi 0, %s52
      %s54 = sphi 0, %s52
      %s55 = sphi 0, %s54
      %s69 = sphi 0, %s55
      %s73 = sphi 0, %s73
      %s75 = sphi 0, %s73
      %s76 = sphi 0, %s75
      %s90 = sphi 0, %s76
      %s94 = sphi 0, %s94
      %s96 = sphi 0, %s94
      %s97 = sphi 0, %s96
      %s111 = sphi 0, %s97
      %s115 = sphi 0, %s115
      %s117 = sphi 0, %s115
      %s118 = sphi 0, %s117
      %s132 = sphi 0, %s118
      %s138 = sphi 0, %s140
      %s141 = sphi 0, %s138
      %s142 = sphi 0, %s141
      %s158 = sphi 0, %s142
    $region4: #{tpu_custom_call.1} parent=1 // loop_header_branch
      %21 = sbr.rel (%p19) target = $region8
    $region5: #{tpu_custom_call.1} parent=1 // loop_body
      %s23 = ssub.s32 %s18, 1
      %s24 = ssub.s32 %s18, 2
      %s25 = sadd.s32 %s18, 1
      %s26 = ssub.s32 %s18, %s25
      %p27 = scmp.eq.s32.totalorder %s26, 0
      %s29 = sadd.s32 %s28, 1
      %s30 = scalar_select %p27, %s28, %s29
      %p33 = pneg %p27
      %p34 = scmp.eq.s32.totalorder %s18, 1
      %p35 = por %p33, %p34
      %p36 = scmp.ne.s32.totalorder %s28, %s31
      %p37 = scmp.eq.s32.totalorder %s18, 0
      %p38 = por %p36, %p37
      %p39 = scmp.ne.s32.totalorder %s28, %s31
      %p40 = scmp.eq.s32.totalorder %s23, 1
      %p41 = por %p39, %p40
      %p42 = scmp.ne.s32.totalorder %s31, %s32
      %p43 = scmp.eq.s32.totalorder %s23, 0
      %p44 = por %p42, %p43
      %p45 = scmp.ne.s32.totalorder %s31, %s32
      %p46 = scmp.eq.s32.totalorder %s24, 1
      %p47 = por %p45, %p46
      %p49 = scmp.ne.s32.totalorder %s32, %s48
      %p50 = scmp.eq.s32.totalorder %s24, 0
      %p51 = por %p49, %p50
      %s53 = sadd.s32 %s52, 1
      %p56 = scmp.eq.s32.totalorder %s18, 1
      %p57 = scmp.ne.s32.totalorder %s52, %s54
      %p58 = scmp.eq.s32.totalorder %s18, 0
      %p59 = por %p57, %p58
      %p60 = scmp.ne.s32.totalorder %s52, %s54
      %p61 = scmp.eq.s32.totalorder %s23, 1
      %p62 = por %p60, %p61
      %p63 = scmp.ne.s32.totalorder %s54, %s55
      %p64 = scmp.eq.s32.totalorder %s23, 0
      %p65 = por %p63, %p64
      %p66 = scmp.ne.s32.totalorder %s54, %s55
      %p67 = scmp.eq.s32.totalorder %s24, 1
      %p68 = por %p66, %p67
      %p70 = scmp.ne.s32.totalorder %s55, %s69
      %p71 = scmp.eq.s32.totalorder %s24, 0
      %p72 = por %p70, %p71
      %s74 = sadd.s32 %s73, 1
      %p77 = scmp.eq.s32.totalorder %s18, 1
      %p78 = scmp.ne.s32.totalorder %s73, %s75
      %p79 = scmp.eq.s32.totalorder %s18, 0
      %p80 = por %p78, %p79
      %p81 = scmp.ne.s32.totalorder %s73, %s75
      %p82 = scmp.eq.s32.totalorder %s23, 1
      %p83 = por %p81, %p82
      %p84 = scmp.ne.s32.totalorder %s75, %s76
      %p85 = scmp.eq.s32.totalorder %s23, 0
      %p86 = por %p84, %p85
      %p87 = scmp.ne.s32.totalorder %s75, %s76
      %p88 = scmp.eq.s32.totalorder %s24, 1
      %p89 = por %p87, %p88
      %p91 = scmp.ne.s32.totalorder %s76, %s90
      %p92 = scmp.eq.s32.totalorder %s24, 0
      %p93 = por %p91, %p92
      %s95 = sadd.s32 %s94, 1
      %p98 = scmp.eq.s32.totalorder %s18, 1
      %p99 = scmp.ne.s32.totalorder %s94, %s96
      %p100 = scmp.eq.s32.totalorder %s18, 0
      %p101 = por %p99, %p100
      %p102 = scmp.ne.s32.totalorder %s94, %s96
      %p103 = scmp.eq.s32.totalorder %s23, 1
      %p104 = por %p102, %p103
      %p105 = scmp.ne.s32.totalorder %s96, %s97
      %p106 = scmp.eq.s32.totalorder %s23, 0
      %p107 = por %p105, %p106
      %p108 = scmp.ne.s32.totalorder %s96, %s97
      %p109 = scmp.eq.s32.totalorder %s24, 1
      %p110 = por %p108, %p109
      %p112 = scmp.ne.s32.totalorder %s97, %s111
      %p113 = scmp.eq.s32.totalorder %s24, 0
      %p114 = por %p112, %p113
      %s116 = sadd.s32 %s115, 1
      %p119 = scmp.eq.s32.totalorder %s18, 1
      %p120 = scmp.ne.s32.totalorder %s115, %s117
      %p121 = scmp.eq.s32.totalorder %s18, 0
      %p122 = por %p120, %p121
      %p123 = scmp.ne.s32.totalorder %s115, %s117
      %p124 = scmp.eq.s32.totalorder %s23, 1
      %p125 = por %p123, %p124
      %p126 = scmp.ne.s32.totalorder %s117, %s118
      %p127 = scmp.eq.s32.totalorder %s23, 0
      %p128 = por %p126, %p127
      %p129 = scmp.ne.s32.totalorder %s117, %s118
      %p130 = scmp.eq.s32.totalorder %s24, 1
      %p131 = por %p129, %p130
      %p133 = scmp.ne.s32.totalorder %s118, %s132
      %p134 = scmp.eq.s32.totalorder %s24, 0
      %p135 = por %p133, %p134
      %s136 = ssub.s32 %s18, %s25
      %p137 = scmp.eq.s32.totalorder %s136, 0
      %s139 = sadd.s32 %s138, 1
      %s140 = scalar_select %p137, %s138, %s139
      %p143 = pneg %p137
      %p144 = scmp.eq.s32.totalorder %s18, 1
      %p145 = por %p143, %p144
      %p146 = scmp.ne.s32.totalorder %s138, %s141
      %p147 = scmp.eq.s32.totalorder %s18, 0
      %p148 = por %p146, %p147
      %p149 = scmp.ne.s32.totalorder %s138, %s141
      %p150 = scmp.eq.s32.totalorder %s23, 1
      %p151 = por %p149, %p150
      %p152 = scmp.ne.s32.totalorder %s141, %s142
      %p153 = scmp.eq.s32.totalorder %s23, 0
      %p154 = por %p152, %p153
      %p155 = scmp.ne.s32.totalorder %s141, %s142
      %p156 = scmp.eq.s32.totalorder %s24, 1
      %p157 = por %p155, %p156
      %p159 = scmp.ne.s32.totalorder %s142, %s158
      %p160 = scmp.eq.s32.totalorder %s24, 0
      %p161 = por %p159, %p160
      %p162 = scmp.le.s32.totalorder 1, %s18
      %p163 = scmp.lt.s32.totalorder %s18, 3
      %p164 = pnand %p162, %p163
      %p165 = pneg %p164
      // Predicated region
      $region9: #{tpu_custom_call.1} parent=5 // pred_check
        _
      $region10: #{tpu_custom_call.1} parent=5 // pred_check_branch
        %167 = sbr.rel (%p164) target = $region12
      $region11: #{tpu_custom_call.1} parent=5 // pred_region
        %s168 = ssub.s32 %s18, 1
        // Predicated region
        $region13: #{tpu_custom_call.1} parent=11 // pred_check
          %p169 = pneg %p65
        $region14: #{tpu_custom_call.1} parent=11 // pred_check_branch
          %171 = sbr.rel (%p169) target = $region16
        $region15: #{tpu_custom_call.1} parent=11 // pred_region
          %s173 = ssub.s32 2048, 2048
          %174 = vsyncadd [#allocation6], %s173
          %s175 = sshll.u32 [#allocation5], 4
          %s176 = int_to_ptr.vmem [resolvable:$true] %s175
          %181 = dma.hbm_to_vmem [thread:$0]  %s1, 2048, %s176, [#allocation6], 128, 128, 8
        $region16: #{tpu_custom_call.1} parent=11 // pred_fallthru
          _
        // Predicated region
        $region17: #{tpu_custom_call.1} parent=11 // pred_check
          %p182 = pneg %p86
        $region18: #{tpu_custom_call.1} parent=11 // pred_check_branch
          %184 = sbr.rel (%p182) target = $region20
        $region19: #{tpu_custom_call.1} parent=11 // pred_region
          _
        $region20: #{tpu_custom_call.1} parent=11 // pred_fallthru
          _
        // Predicated region
        $region21: #{tpu_custom_call.1} parent=11 // pred_check
          %p185 = pneg %p107
        $region22: #{tpu_custom_call.1} parent=11 // pred_check_branch
          %187 = sbr.rel (%p185) target = $region24
        $region23: #{tpu_custom_call.1} parent=11 // pred_region
          %s189 = ssub.s32 2048, 2048
          %190 = vsyncadd [#allocation6], %s189
          %s191 = sshll.u32 [#allocation7], 4
          %s192 = int_to_ptr.vmem [resolvable:$true] %s191
          %197 = dma.hbm_to_vmem [thread:$0]  %s3, 2048, %s192, [#allocation6], 128, 128, 8
        $region24: #{tpu_custom_call.1} parent=11 // pred_fallthru
          _
        // Predicated region
        $region25: #{tpu_custom_call.1} parent=11 // pred_check
          %p198 = pneg %p128
        $region26: #{tpu_custom_call.1} parent=11 // pred_check_branch
          %200 = sbr.rel (%p198) target = $region28
        $region27: #{tpu_custom_call.1} parent=11 // pred_region
          _
        $region28: #{tpu_custom_call.1} parent=11 // pred_fallthru
          _
      $region12: #{tpu_custom_call.1} parent=5 // pred_fallthru
        _
      %p201 = scmp.lt.s32.totalorder %s18, 2
      // Predicated region
      $region29: #{tpu_custom_call.1} parent=5 // pred_check
        %p202 = pneg %p201
      $region30: #{tpu_custom_call.1} parent=5 // pred_check_branch
        %204 = sbr.rel (%p202) target = $region32
      $region31: #{tpu_custom_call.1} parent=5 // pred_region
        // Predicated region
        $region33: #{tpu_custom_call.1} parent=31 // pred_check
          %p205 = pneg %p38
        $region34: #{tpu_custom_call.1} parent=31 // pred_check_branch
          %207 = sbr.rel (%p205) target = $region36
        $region35: #{tpu_custom_call.1} parent=31 // pred_region
          %s208 = sand.u32 %s28, 1
          %s209 = scalar_lea.sflag [#allocation3], %s208
          %s210 = sand.u32 %s28, 1
          %s211 = smul.addr %s210, 8
          %s212 = scalar_lea.vmem [#allocation2], %s211
          %s214 = ssub.s32 128, 128
          %215 = vsyncadd %s209, %s214
          %s216 = smul.addr %s18, 128
          %s217 = scalar_lea.hbm %s0, %s216
          %s219 = sshll.u32 %s212, 4
          %s220 = int_to_ptr.vmem [resolvable:$true] %s219
          %222 = dma.hbm_to_vmem [thread:$0]  %s217, 128, %s220, %s209
        $region36: #{tpu_custom_call.1} parent=31 // pred_fallthru
          _
      $region32: #{tpu_custom_call.1} parent=5 // pred_fallthru
        _
      %p223 = scmp.le.s32.totalorder 1, %s18
      %p224 = scmp.lt.s32.totalorder %s18, 3
      %p225 = pnand %p223, %p224
      %p226 = pneg %p225
      // Predicated region
      $region37: #{tpu_custom_call.1} parent=5 // pred_check
        _
      $region38: #{tpu_custom_call.1} parent=5 // pred_check_branch
        %228 = sbr.rel (%p225) target = $region40
      $region39: #{tpu_custom_call.1} parent=5 // pred_region
        %s229 = ssub.s32 %s18, 1
        %s230 = sand.u32 %s31, 1
        %s231 = scalar_lea.sflag [#allocation3], %s230
        %s232 = sand.u32 %s31, 1
        %s233 = smul.addr %s232, 8
        %s234 = scalar_lea.vmem [#allocation2], %s233
        // Predicated region
        $region41: #{tpu_custom_call.1} parent=39 // pred_check
          %p235 = pneg %p44
        $region42: #{tpu_custom_call.1} parent=39 // pred_check_branch
          %237 = sbr.rel (%p235) target = $region44
        $region43: #{tpu_custom_call.1} parent=39 // pred_region
          %238 = dma.done %s231, 128
        $region44: #{tpu_custom_call.1} parent=39 // pred_fallthru
          _
        // Predicated region
        $region45: #{tpu_custom_call.1} parent=39 // pred_check
          %p239 = pneg %p65
        $region46: #{tpu_custom_call.1} parent=39 // pred_check_branch
          %241 = sbr.rel (%p239) target = $region48
        $region47: #{tpu_custom_call.1} parent=39 // pred_region
          %242 = dma.done [#allocation6], 2048
        $region48: #{tpu_custom_call.1} parent=39 // pred_fallthru
          _
        // Predicated region
        $region49: #{tpu_custom_call.1} parent=39 // pred_check
          %p243 = pneg %p107
        $region50: #{tpu_custom_call.1} parent=39 // pred_check_branch
          %245 = sbr.rel (%p243) target = $region52
        $region51: #{tpu_custom_call.1} parent=39 // pred_region
          %246 = dma.done [#allocation6], 2048
        $region52: #{tpu_custom_call.1} parent=39 // pred_fallthru
          _
        %s247 = sand.u32 %s31, 1
        %s248 = scalar_lea.sflag [#allocation3], %s247
        %s249 = sand.u32 %s31, 1
        %s250 = smul.addr %s249, 8
        %s251 = scalar_lea.vmem [#allocation2], %s250
        %p252 = pneg %p44
        %p253 = pneg %p41
        %p254 = pneg %p65
        %p255 = pneg %p62
        %p256 = pneg %p86
        %p257 = pneg %p83
        %p258 = pneg %p107
        %p259 = pneg %p104
        %p260 = pneg %p128
        %p261 = pneg %p125
        %p262 = pneg %p154
        %p263 = pneg %p151
        %s264 = sand.u32 %s141, 1
        %s265 = scalar_lea.sflag [#allocation4], %s264
        %s266 = sand.u32 %s141, 1
        %s267 = smul.addr %s266, 8
        %s268 = scalar_lea.vmem [#allocation8], %s267
        %v269 = vld [vmem:[%s234] sm:$0xff]
        %v270 = vld [vmem:[#allocation5] sm:$0xff]
        %v271 = vld [vmem:[#allocation5 + $0x8] sm:$0xff]
        %v272 = vld [vmem:[#allocation5 + $0x10] sm:$0xff]
        %v273 = vld [vmem:[#allocation5 + $0x18] sm:$0xff]
        %v274 = vld [vmem:[#allocation5 + $0x20] sm:$0xff]
        %v275 = vld [vmem:[#allocation5 + $0x28] sm:$0xff]
        %v276 = vld [vmem:[#allocation5 + $0x30] sm:$0xff]
        %v277 = vld [vmem:[#allocation5 + $0x38] sm:$0xff]
        %v278 = vld [vmem:[#allocation5 + $0x40] sm:$0xff]
        %v279 = vld [vmem:[#allocation5 + $0x48] sm:$0xff]
        %v280 = vld [vmem:[#allocation5 + $0x50] sm:$0xff]
        %v281 = vld [vmem:[#allocation5 + $0x58] sm:$0xff]
        %v282 = vld [vmem:[#allocation5 + $0x60] sm:$0xff]
        %v283 = vld [vmem:[#allocation5 + $0x68] sm:$0xff]
        %v284 = vld [vmem:[#allocation5 + $0x70] sm:$0xff]
        %v285 = vld [vmem:[#allocation5 + $0x78] sm:$0xff]
        %v286 = vld [vmem:[%s2] sm:$0x1]
        %v288 = vlaneseq
        %v289 = vshrl.u32 %v288, 7
        %v290 = vsub.s32 0, %v289
        %v291 = vrot.slane %v286, %v290
        %293 = vmatprep.subr.mxu0 0.0
        %294 = vmatpush1.msra.mxu0 %v270
        %295 = vmatprep.subr.mxu0 0.0
        %296 = vmatpush1.msra.mxu0 %v271
        %297 = vmatprep.subr.mxu0 0.0
        %298 = vmatpush1.msra.mxu0 %v272
        %299 = vmatprep.subr.mxu0 0.0
        %300 = vmatpush1.msra.mxu0 %v273
        %301 = vmatprep.subr.mxu0 0.0
        %302 = vmatpush1.msra.mxu0 %v274
        %303 = vmatprep.subr.mxu0 0.0
        %304 = vmatpush1.msra.mxu0 %v275
        %305 = vmatprep.subr.mxu0 0.0
        %306 = vmatpush1.msra.mxu0 %v276
        %307 = vmatprep.subr.mxu0 0.0
        %308 = vmatpush1.msra.mxu0 %v277
        %309 = vmatprep.subr.mxu0 0.0
        %310 = vmatpush1.msra.mxu0 %v278
        %311 = vmatprep.subr.mxu0 0.0
        %312 = vmatpush1.msra.mxu0 %v279
        %313 = vmatprep.subr.mxu0 0.0
        %314 = vmatpush1.msra.mxu0 %v280
        %315 = vmatprep.subr.mxu0 0.0
        %316 = vmatpush1.msra.mxu0 %v281
        %317 = vmatprep.subr.mxu0 0.0
        %318 = vmatpush1.msra.mxu0 %v282
        %319 = vmatprep.subr.mxu0 0.0
        %320 = vmatpush1.msra.mxu0 %v283
        %321 = vmatprep.subr.mxu0 0.0
        %322 = vmatpush1.msra.mxu0 %v284
        %323 = vmatprep.subr.mxu0 0.0
        %324 = vmatpush1.msra.mxu0 %v285
        %325 = vmatprep.subr.mxu0 0.0
        %326 = vmatpush1.msra.mxu0 0.0
        %327 = vmatprep.subr.mxu0 0.0
        %328 = vmatpush1.msra.mxu0 0.0
        %329 = vmatprep.subr.mxu0 0.0
        %330 = vmatpush1.msra.mxu0 0.0
        %331 = vmatprep.subr.mxu0 0.0
        %332 = vmatpush1.msra.mxu0 0.0
        %333 = vmatprep.subr.mxu0 0.0
        %334 = vmatpush1.msra.mxu0 0.0
        %335 = vmatprep.subr.mxu0 0.0
        %336 = vmatpush1.msra.mxu0 0.0
        %337 = vmatprep.subr.mxu0 0.0
        %338 = vmatpush1.msra.mxu0 0.0
        %339 = vmatprep.subr.mxu0 0.0
        %340 = vmatpush1.msra.mxu0 0.0
        %341 = vmatprep.subr.mxu0 0.0
        %342 = vmatpush1.msra.mxu0 0.0
        %343 = vmatprep.subr.mxu0 0.0
        %344 = vmatpush1.msra.mxu0 0.0
        %345 = vmatprep.subr.mxu0 0.0
        %346 = vmatpush1.msra.mxu0 0.0
        %347 = vmatprep.subr.mxu0 0.0
        %348 = vmatpush1.msra.mxu0 0.0
        %349 = vmatprep.subr.mxu0 0.0
        %350 = vmatpush1.msra.mxu0 0.0
        %351 = vmatprep.subr.mxu0 0.0
        %352 = vmatpush1.msra.mxu0 0.0
        %353 = vmatprep.subr.mxu0 0.0
        %354 = vmatpush1.msra.mxu0 0.0
        %355 = vmatprep.subr.mxu0 0.0
        %356 = vmatpush1.msra.mxu0 0.0
        %357 = vmatprep.mubr.f32.mxu0 0.0
        %358 = vmatmul.mubr.f32.gmra.mrb[0].mxu0 %v269
        %v359 = vpop.f32.mrb[0].mxu0
        %v360 = vadd.f32 %v291, %v359
        %v361 = vpop.f32.mrb[0].mxu0
        %362 = vdwg.mxu0
        %v363 = vmul.f32 %v360, 0.5
        %v364 = vtanh.pop %v363
        %v365 = vmul.f32 %v364, 0.5
        %v366 = vadd.f32 %v365, 0.5
        %v367 = vld [vmem:[#allocation7] sm:$0xff]
        %v368 = vld [vmem:[#allocation7 + $0x8] sm:$0xff]
        %v369 = vld [vmem:[#allocation7 + $0x10] sm:$0xff]
        %v370 = vld [vmem:[#allocation7 + $0x18] sm:$0xff]
        %v371 = vld [vmem:[#allocation7 + $0x20] sm:$0xff]
        %v372 = vld [vmem:[#allocation7 + $0x28] sm:$0xff]
        %v373 = vld [vmem:[#allocation7 + $0x30] sm:$0xff]
        %v374 = vld [vmem:[#allocation7 + $0x38] sm:$0xff]
        %v375 = vld [vmem:[#allocation7 + $0x40] sm:$0xff]
        %v376 = vld [vmem:[#allocation7 + $0x48] sm:$0xff]
        %v377 = vld [vmem:[#allocation7 + $0x50] sm:$0xff]
        %v378 = vld [vmem:[#allocation7 + $0x58] sm:$0xff]
        %v379 = vld [vmem:[#allocation7 + $0x60] sm:$0xff]
        %v380 = vld [vmem:[#allocation7 + $0x68] sm:$0xff]
        %v381 = vld [vmem:[#allocation7 + $0x70] sm:$0xff]
        %v382 = vld [vmem:[#allocation7 + $0x78] sm:$0xff]
        %v383 = vld [vmem:[%s4] sm:$0x1]
        %v385 = vlaneseq
        %v386 = vshrl.u32 %v385, 7
        %v387 = vsub.s32 0, %v386
        %v388 = vrot.slane %v383, %v387
        %390 = vmatprep.subr.mxu0 0.0
        %391 = vmatpush1.msra.mxu0 %v367
        %392 = vmatprep.subr.mxu0 0.0
        %393 = vmatpush1.msra.mxu0 %v368
        %394 = vmatprep.subr.mxu0 0.0
        %395 = vmatpush1.msra.mxu0 %v369
        %396 = vmatprep.subr.mxu0 0.0
        %397 = vmatpush1.msra.mxu0 %v370
        %398 = vmatprep.subr.mxu0 0.0
        %399 = vmatpush1.msra.mxu0 %v371
        %400 = vmatprep.subr.mxu0 0.0
        %401 = vmatpush1.msra.mxu0 %v372
        %402 = vmatprep.subr.mxu0 0.0
        %403 = vmatpush1.msra.mxu0 %v373
        %404 = vmatprep.subr.mxu0 0.0
        %405 = vmatpush1.msra.mxu0 %v374
        %406 = vmatprep.subr.mxu0 0.0
        %407 = vmatpush1.msra.mxu0 %v375
        %408 = vmatprep.subr.mxu0 0.0
        %409 = vmatpush1.msra.mxu0 %v376
        %410 = vmatprep.subr.mxu0 0.0
        %411 = vmatpush1.msra.mxu0 %v377
        %412 = vmatprep.subr.mxu0 0.0
        %413 = vmatpush1.msra.mxu0 %v378
        %414 = vmatprep.subr.mxu0 0.0
        %415 = vmatpush1.msra.mxu0 %v379
        %416 = vmatprep.subr.mxu0 0.0
        %417 = vmatpush1.msra.mxu0 %v380
        %418 = vmatprep.subr.mxu0 0.0
        %419 = vmatpush1.msra.mxu0 %v381
        %420 = vmatprep.subr.mxu0 0.0
        %421 = vmatpush1.msra.mxu0 %v382
        %422 = vmatprep.subr.mxu0 0.0
        %423 = vmatpush1.msra.mxu0 0.0
        %424 = vmatprep.subr.mxu0 0.0
        %425 = vmatpush1.msra.mxu0 0.0
        %426 = vmatprep.subr.mxu0 0.0
        %427 = vmatpush1.msra.mxu0 0.0
        %428 = vmatprep.subr.mxu0 0.0
        %429 = vmatpush1.msra.mxu0 0.0
        %430 = vmatprep.subr.mxu0 0.0
        %431 = vmatpush1.msra.mxu0 0.0
        %432 = vmatprep.subr.mxu0 0.0
        %433 = vmatpush1.msra.mxu0 0.0
        %434 = vmatprep.subr.mxu0 0.0
        %435 = vmatpush1.msra.mxu0 0.0
        %436 = vmatprep.subr.mxu0 0.0
        %437 = vmatpush1.msra.mxu0 0.0
        %438 = vmatprep.subr.mxu0 0.0
        %439 = vmatpush1.msra.mxu0 0.0
        %440 = vmatprep.subr.mxu0 0.0
        %441 = vmatpush1.msra.mxu0 0.0
        %442 = vmatprep.subr.mxu0 0.0
        %443 = vmatpush1.msra.mxu0 0.0
        %444 = vmatprep.subr.mxu0 0.0
        %445 = vmatpush1.msra.mxu0 0.0
        %446 = vmatprep.subr.mxu0 0.0
        %447 = vmatpush1.msra.mxu0 0.0
        %448 = vmatprep.subr.mxu0 0.0
        %449 = vmatpush1.msra.mxu0 0.0
        %450 = vmatprep.subr.mxu0 0.0
        %451 = vmatpush1.msra.mxu0 0.0
        %452 = vmatprep.subr.mxu0 0.0
        %453 = vmatpush1.msra.mxu0 0.0
        %454 = vmatprep.mubr.f32.mxu0 0.0
        %455 = vmatmul.mubr.f32.gmra.mrb[0].mxu0 %v366
        %v456 = vpop.f32.mrb[0].mxu0
        %v457 = vadd.f32 %v388, %v456
        %v458 = vpop.f32.mrb[0].mxu0
        %459 = vdwg.mxu0
        %v460 = vmul.f32 %v457, 0.5
        %v461 = vtanh.pop %v460
        %v462 = vmul.f32 %v461, 0.5
        %v463 = vadd.f32 %v462, 0.5
        %464 = vst [vmem:[%s268] sm:$0xff] %v463
        %s465 = sand.u32 %s141, 1
        %s466 = scalar_lea.sflag [#allocation4], %s465
        %s467 = sand.u32 %s141, 1
        %s468 = smul.addr %s467, 8
        %s469 = scalar_lea.vmem [#allocation8], %s468
        // Predicated region
        $region53: #{tpu_custom_call.1} parent=39 // pred_check
          %p470 = pneg %p151
        $region54: #{tpu_custom_call.1} parent=39 // pred_check_branch
          %472 = sbr.rel (%p470) target = $region56
        $region55: #{tpu_custom_call.1} parent=39 // pred_region
          %s474 = ssub.s32 128, 128
          %475 = vsyncadd %s466, %s474
          %s476 = smul.addr %s23, 128
          %s477 = scalar_lea.hbm %s5, %s476
          %s479 = sshll.u32 %s469, 4
          %s480 = int_to_ptr.vmem [resolvable:$true] %s479
          %482 = dma.vmem_to_hbm [thread:$0]  %s480, 128, %s477, %s466
        $region56: #{tpu_custom_call.1} parent=39 // pred_fallthru
          _
      $region40: #{tpu_custom_call.1} parent=5 // pred_fallthru
        _
      %p483 = scmp.le.s32.totalorder 2, %s18
      // Predicated region
      $region57: #{tpu_custom_call.1} parent=5 // pred_check
        %p484 = pneg %p483
      $region58: #{tpu_custom_call.1} parent=5 // pred_check_branch
        %486 = sbr.rel (%p484) target = $region60
      $region59: #{tpu_custom_call.1} parent=5 // pred_region
        %s487 = ssub.s32 %s18, 2
        // Predicated region
        $region61: #{tpu_custom_call.1} parent=59 // pred_check
          %p488 = pneg %p157
        $region62: #{tpu_custom_call.1} parent=59 // pred_check_branch
          %490 = sbr.rel (%p488) target = $region64
        $region63: #{tpu_custom_call.1} parent=59 // pred_region
          %s491 = sand.u32 %s142, 1
          %s492 = scalar_lea.sflag [#allocation4], %s491
          %s493 = sand.u32 %s142, 1
          %s494 = smul.addr %s493, 8
          %s495 = scalar_lea.vmem [#allocation8], %s494
          %496 = dma.done %s492, 128
        $region64: #{tpu_custom_call.1} parent=59 // pred_fallthru
          _
      $region60: #{tpu_custom_call.1} parent=5 // pred_fallthru
        _
    $region6: #{tpu_custom_call.1} parent=1 // loop_footer
      %s22 = sadd.s32 1, %s18
    $region7: #{tpu_custom_call.1} parent=1 // loop_footer_branch
      %17 = sbr.rel target = $region3
    $region8: #{tpu_custom_call.1} parent=1 // loop_exit
      _
    %497 = vsyncpa [#allocation3], 1
    %s498 = scalar_lea.sflag [#allocation3], 1
    %499 = vsyncpa %s498, 1
    %500 = vsyncpa [#allocation6], 1
    %501 = vsyncpa [#allocation4], 1
    %s502 = scalar_lea.sflag [#allocation4], 1
    %503 = vsyncpa %s502, 1

// kernel: tpu_custom_call.1
$region0: #{tpu_custom_call.1}
  #allocation0 [shape = 'u32[]', space=smem, size = 0x4, offset = 0x4, fixed_abs, tag = 'smem constant byte address 0x4 - core index']
  #allocation1 [shape = 'u32[144,128]{1,0:T(1,128)}', space=vmem, size = 0x12000, scoped, tag = 'internal scratch']
  %s0 = inlined_call_operand.hbm [shape: f32[16,128], index: 0, kind: input, shape index: {}]
  %s1 = inlined_call_operand.hbm [shape: f32[128,128], index: 1, kind: input, shape index: {}]
  %s2 = inlined_call_operand.vmem [shape: f32[1,128], index: 2, kind: input, shape index: {}]
  %s3 = inlined_call_operand.hbm [shape: f32[128,128], index: 3, kind: input, shape index: {}]
  %s4 = inlined_call_operand.vmem [shape: f32[1,128], index: 4, kind: input, shape index: {}]
  %s5 = inlined_call_operand.hbm [shape: f32[16,128], index: 5, kind: output, shape index: {}]
  %s6 = sld [smem:[#allocation0]]
  $region65: #{tpu_custom_call.1} parent=0
    _
  %s8 = ssub.s32 1, %s6
  %s9 = scalar_select 0, %s8, %s6
  $region1: #{tpu_custom_call.1} parent=0
    #allocation2 [shape = 'u8[8192]{0}', space=vmem, size = 0x2000, scoped, tag = 'input window, operand 0']
    #allocation3 [shape = 's32[2]{0}', space=sflag, size = 0x8, scoped, tag = 'scoped memory for tpu_custom_call.1']
    #allocation4 [shape = 's32[2]{0}', space=sflag, size = 0x8, scoped, tag = 'scoped memory for tpu_custom_call.1']
    #allocation5 [shape = 'u8[65536]{0}', space=vmem, size = 0x10000, scoped, tag = 'input window, operand 1, single buffered']
    #allocation6 [shape = 's32[1]{0}', space=sflag, size = 0x4, scoped, tag = 'scoped memory for tpu_custom_call.1']
    #allocation7 [shape = 'u8[65536]{0}', space=vmem, size = 0x10000, scoped, tag = 'input window, operand 3, single buffered']
    #allocation8 [shape = 'u8[8192]{0}', space=vmem, size = 0x2000, scoped, tag = 'output window, operand 0']
    %10 = vsyncpa [#allocation3], 0
    %s11 = scalar_lea.sflag [#allocation3], 1
    %12 = vsyncpa %s11, 0
    %13 = vsyncpa [#allocation6], 0
    %14 = vsyncpa [#allocation4], 0
    %s15 = scalar_lea.sflag [#allocation4], 1
    %16 = vsyncpa %s15, 0
    loop: start=0, step=1, limit=4
    $region2: #{tpu_custom_call.1} parent=1 // loop_pre_header
      _
    $region3: #{tpu_custom_call.1} parent=1 // loop_header
      %s18 = sphi 0, %s22
      %p19 = scmp.ge.s32.totalorder %s18, 4
      %s28 = sphi 0, %s30
      %s31 = sphi 0, %s28
      %s32 = sphi 0, %s31
      %s48 = sphi 0, %s32
      %s52 = sphi 0, %s52
      %s54 = sphi 0, %s52
      %s55 = sphi 0, %s54
      %s69 = sphi 0, %s55
      %s73 = sphi 0, %s73
      %s75 = sphi 0, %s73
      %s76 = sphi 0, %s75
      %s90 = sphi 0, %s76
      %s94 = sphi 0, %s94
      %s96 = sphi 0, %s94
      %s97 = sphi 0, %s96
      %s111 = sphi 0, %s97
      %s115 = sphi 0, %s115
      %s117 = sphi 0, %s115
      %s118 = sphi 0, %s117
      %s132 = sphi 0, %s118
      %s138 = sphi 0, %s140
      %s141 = sphi 0, %s138
      %s142 = sphi 0, %s141
      %s158 = sphi 0, %s142
    $region4: #{tpu_custom_call.1} parent=1 // loop_header_branch
      %21 = sbr.rel (%p19) target = $region8
    $region5: #{tpu_custom_call.1} parent=1 // loop_body
      %s23 = ssub.s32 %s18, 1
      %s24 = ssub.s32 %s18, 2
      %s25 = sadd.s32 %s18, 1
      %s26 = ssub.s32 %s18, %s25
      %p27 = scmp.eq.s32.totalorder %s26, 0
      %s29 = sadd.s32 %s28, 1
      %s30 = scalar_select %p27, %s28, %s29
      %p33 = pneg %p27
      %p34 = scmp.eq.s32.totalorder %s18, 1
      %p35 = por %p33, %p34
      %p36 = scmp.ne.s32.totalorder %s28, %s31
      %p37 = scmp.eq.s32.totalorder %s18, 0
      %p38 = por %p36, %p37
      %p39 = scmp.ne.s32.totalorder %s28, %s31
      %p40 = scmp.eq.s32.totalorder %s23, 1
      %p41 = por %p39, %p40
      %p42 = scmp.ne.s32.totalorder %s31, %s32
      %p43 = scmp.eq.s32.totalorder %s23, 0
      %p44 = por %p42, %p43
      %p45 = scmp.ne.s32.totalorder %s31, %s32
      %p46 = scmp.eq.s32.totalorder %s24, 1
      %p47 = por %p45, %p46
      %p49 = scmp.ne.s32.totalorder %s32, %s48
      %p50 = scmp.eq.s32.totalorder %s24, 0
      %p51 = por %p49, %p50
      %s53 = sadd.s32 %s52, 1
      %p56 = scmp.eq.s32.totalorder %s18, 1
      %p57 = scmp.ne.s32.totalorder %s52, %s54
      %p58 = scmp.eq.s32.totalorder %s18, 0
      %p59 = por %p57, %p58
      %p60 = scmp.ne.s32.totalorder %s52, %s54
      %p61 = scmp.eq.s32.totalorder %s23, 1
      %p62 = por %p60, %p61
      %p63 = scmp.ne.s32.totalorder %s54, %s55
      %p64 = scmp.eq.s32.totalorder %s23, 0
      %p65 = por %p63, %p64
      %p66 = scmp.ne.s32.totalorder %s54, %s55
      %p67 = scmp.eq.s32.totalorder %s24, 1
      %p68 = por %p66, %p67
      %p70 = scmp.ne.s32.totalorder %s55, %s69
      %p71 = scmp.eq.s32.totalorder %s24, 0
      %p72 = por %p70, %p71
      %s74 = sadd.s32 %s73, 1
      %p77 = scmp.eq.s32.totalorder %s18, 1
      %p78 = scmp.ne.s32.totalorder %s73, %s75
      %p79 = scmp.eq.s32.totalorder %s18, 0
      %p80 = por %p78, %p79
      %p81 = scmp.ne.s32.totalorder %s73, %s75
      %p82 = scmp.eq.s32.totalorder %s23, 1
      %p83 = por %p81, %p82
      %p84 = scmp.ne.s32.totalorder %s75, %s76
      %p85 = scmp.eq.s32.totalorder %s23, 0
      %p86 = por %p84, %p85
      %p87 = scmp.ne.s32.totalorder %s75, %s76
      %p88 = scmp.eq.s32.totalorder %s24, 1
      %p89 = por %p87, %p88
      %p91 = scmp.ne.s32.totalorder %s76, %s90
      %p92 = scmp.eq.s32.totalorder %s24, 0
      %p93 = por %p91, %p92
      %s95 = sadd.s32 %s94, 1
      %p98 = scmp.eq.s32.totalorder %s18, 1
      %p99 = scmp.ne.s32.totalorder %s94, %s96
      %p100 = scmp.eq.s32.totalorder %s18, 0
      %p101 = por %p99, %p100
      %p102 = scmp.ne.s32.totalorder %s94, %s96
      %p103 = scmp.eq.s32.totalorder %s23, 1
      %p104 = por %p102, %p103
      %p105 = scmp.ne.s32.totalorder %s96, %s97
      %p106 = scmp.eq.s32.totalorder %s23, 0
      %p107 = por %p105, %p106
      %p108 = scmp.ne.s32.totalorder %s96, %s97
      %p109 = scmp.eq.s32.totalorder %s24, 1
      %p110 = por %p108, %p109
      %p112 = scmp.ne.s32.totalorder %s97, %s111
      %p113 = scmp.eq.s32.totalorder %s24, 0
      %p114 = por %p112, %p113
      %s116 = sadd.s32 %s115, 1
      %p119 = scmp.eq.s32.totalorder %s18, 1
      %p120 = scmp.ne.s32.totalorder %s115, %s117
      %p121 = scmp.eq.s32.totalorder %s18, 0
      %p122 = por %p120, %p121
      %p123 = scmp.ne.s32.totalorder %s115, %s117
      %p124 = scmp.eq.s32.totalorder %s23, 1
      %p125 = por %p123, %p124
      %p126 = scmp.ne.s32.totalorder %s117, %s118
      %p127 = scmp.eq.s32.totalorder %s23, 0
      %p128 = por %p126, %p127
      %p129 = scmp.ne.s32.totalorder %s117, %s118
      %p130 = scmp.eq.s32.totalorder %s24, 1
      %p131 = por %p129, %p130
      %p133 = scmp.ne.s32.totalorder %s118, %s132
      %p134 = scmp.eq.s32.totalorder %s24, 0
      %p135 = por %p133, %p134
      %s136 = ssub.s32 %s18, %s25
      %p137 = scmp.eq.s32.totalorder %s136, 0
      %s139 = sadd.s32 %s138, 1
      %s140 = scalar_select %p137, %s138, %s139
      %p143 = pneg %p137
      %p144 = scmp.eq.s32.totalorder %s18, 1
      %p145 = por %p143, %p144
      %p146 = scmp.ne.s32.totalorder %s138, %s141
      %p147 = scmp.eq.s32.totalorder %s18, 0
      %p148 = por %p146, %p147
      %p149 = scmp.ne.s32.totalorder %s138, %s141
      %p150 = scmp.eq.s32.totalorder %s23, 1
      %p151 = por %p149, %p150
      %p152 = scmp.ne.s32.totalorder %s141, %s142
      %p153 = scmp.eq.s32.totalorder %s23, 0
      %p154 = por %p152, %p153
      %p155 = scmp.ne.s32.totalorder %s141, %s142
      %p156 = scmp.eq.s32.totalorder %s24, 1
      %p157 = por %p155, %p156
      %p159 = scmp.ne.s32.totalorder %s142, %s158
      %p160 = scmp.eq.s32.totalorder %s24, 0
      %p161 = por %p159, %p160
      %p162 = scmp.le.s32.totalorder 1, %s18
      %p163 = scmp.lt.s32.totalorder %s18, 3
      %p164 = pnand %p162, %p163
      %p165 = pneg %p164
      // Predicated region
      $region9: #{tpu_custom_call.1} parent=5 // pred_check
        _
      $region10: #{tpu_custom_call.1} parent=5 // pred_check_branch
        %167 = sbr.rel (%p164) target = $region12
      $region11: #{tpu_custom_call.1} parent=5 // pred_region
        %s168 = ssub.s32 %s18, 1
        // Predicated region
        $region13: #{tpu_custom_call.1} parent=11 // pred_check
          %p169 = pneg %p65
        $region14: #{tpu_custom_call.1} parent=11 // pred_check_branch
          %171 = sbr.rel (%p169) target = $region16
        $region15: #{tpu_custom_call.1} parent=11 // pred_region
          %s173 = ssub.s32 2048, 2048
          %174 = vsyncadd [#allocation6], %s173
          %s175 = sshll.u32 [#allocation5], 4
          %s176 = int_to_ptr.vmem [resolvable:$true] %s175
          %181 = dma.hbm_to_vmem [thread:$0]  %s1, 2048, %s176, [#allocation6], 128, 128, 8
        $region16: #{tpu_custom_call.1} parent=11 // pred_fallthru
          _
        // Predicated region
        $region17: #{tpu_custom_call.1} parent=11 // pred_check
          %p182 = pneg %p86
        $region18: #{tpu_custom_call.1} parent=11 // pred_check_branch
          %184 = sbr.rel (%p182) target = $region20
        $region19: #{tpu_custom_call.1} parent=11 // pred_region
          _
        $region20: #{tpu_custom_call.1} parent=11 // pred_fallthru
          _
        // Predicated region
        $region21: #{tpu_custom_call.1} parent=11 // pred_check
          %p185 = pneg %p107
        $region22: #{tpu_custom_call.1} parent=11 // pred_check_branch
          %187 = sbr.rel (%p185) target = $region24
        $region23: #{tpu_custom_call.1} parent=11 // pred_region
          %s189 = ssub.s32 2048, 2048
          %190 = vsyncadd [#allocation6], %s189
          %s191 = sshll.u32 [#allocation7], 4
          %s192 = int_to_ptr.vmem [resolvable:$true] %s191
          %197 = dma.hbm_to_vmem [thread:$0]  %s3, 2048, %s192, [#allocation6], 128, 128, 8
        $region24: #{tpu_custom_call.1} parent=11 // pred_fallthru
          _
        // Predicated region
        $region25: #{tpu_custom_call.1} parent=11 // pred_check
          %p198 = pneg %p128
        $region26: #{tpu_custom_call.1} parent=11 // pred_check_branch
          %200 = sbr.rel (%p198) target = $region28
        $region27: #{tpu_custom_call.1} parent=11 // pred_region
          _
        $region28: #{tpu_custom_call.1} parent=11 // pred_fallthru
          _
      $region12: #{tpu_custom_call.1} parent=5 // pred_fallthru
        _
      %p201 = scmp.lt.s32.totalorder %s18, 2
      // Predicated region
      $region29: #{tpu_custom_call.1} parent=5 // pred_check
        %p202 = pneg %p201
      $region30: #{tpu_custom_call.1} parent=5 // pred_check_branch
        %204 = sbr.rel (%p202) target = $region32
      $region31: #{tpu_custom_call.1} parent=5 // pred_region
        // Predicated region
        $region33: #{tpu_custom_call.1} parent=31 // pred_check
          %p205 = pneg %p38
        $region34: #{tpu_custom_call.1} parent=31 // pred_check_branch
          %207 = sbr.rel (%p205) target = $region36
        $region35: #{tpu_custom_call.1} parent=31 // pred_region
          %s208 = sand.u32 %s28, 1
          %s209 = scalar_lea.sflag [#allocation3], %s208
          %s210 = sand.u32 %s28, 1
          %s211 = smul.addr %s210, 8
          %s212 = scalar_lea.vmem [#allocation2], %s211
          %s214 = ssub.s32 128, 128
          %215 = vsyncadd %s209, %s214
          %s216 = smul.addr %s18, 128
          %s217 = scalar_lea.hbm %s0, %s216
          %s219 = sshll.u32 %s212, 4
          %s220 = int_to_ptr.vmem [resolvable:$true] %s219
          %222 = dma.hbm_to_vmem [thread:$0]  %s217, 128, %s220, %s209
        $region36: #{tpu_custom_call.1} parent=31 // pred_fallthru
          _
      $region32: #{tpu_custom_call.1} parent=5 // pred_fallthru
        _
      %p223 = scmp.le.s32.totalorder 1, %s18
      %p224 = scmp.lt.s32.totalorder %s18, 3
      %p225 = pnand %p223, %p224
      %p226 = pneg %p225
      // Predicated region
      $region37: #{tpu_custom_call.1} parent=5 // pred_check
        _
      $region38: #{tpu_custom_call.1} parent=5 // pred_check_branch
        %228 = sbr.rel (%p225) target = $region40
      $region39: #{tpu_custom_call.1} parent=5 // pred_region
        %s229 = ssub.s32 %s18, 1
        %s230 = sand.u32 %s31, 1
        %s231 = scalar_lea.sflag [#allocation3], %s230
        %s232 = sand.u32 %s31, 1
        %s233 = smul.addr %s232, 8
        %s234 = scalar_lea.vmem [#allocation2], %s233
        // Predicated region
        $region41: #{tpu_custom_call.1} parent=39 // pred_check
          %p235 = pneg %p44
        $region42: #{tpu_custom_call.1} parent=39 // pred_check_branch
          %237 = sbr.rel (%p235) target = $region44
        $region43: #{tpu_custom_call.1} parent=39 // pred_region
          %238 = dma.done %s231, 128
        $region44: #{tpu_custom_call.1} parent=39 // pred_fallthru
          _
        // Predicated region
        $region45: #{tpu_custom_call.1} parent=39 // pred_check
          %p239 = pneg %p65
        $region46: #{tpu_custom_call.1} parent=39 // pred_check_branch
          %241 = sbr.rel (%p239) target = $region48
        $region47: #{tpu_custom_call.1} parent=39 // pred_region
          %242 = dma.done [#allocation6], 2048
        $region48: #{tpu_custom_call.1} parent=39 // pred_fallthru
          _
        // Predicated region
        $region49: #{tpu_custom_call.1} parent=39 // pred_check
          %p243 = pneg %p107
        $region50: #{tpu_custom_call.1} parent=39 // pred_check_branch
          %245 = sbr.rel (%p243) target = $region52
        $region51: #{tpu_custom_call.1} parent=39 // pred_region
          %246 = dma.done [#allocation6], 2048
        $region52: #{tpu_custom_call.1} parent=39 // pred_fallthru
          _
        %s247 = sand.u32 %s31, 1
        %s248 = scalar_lea.sflag [#allocation3], %s247
        %s249 = sand.u32 %s31, 1
        %s250 = smul.addr %s249, 8
        %s251 = scalar_lea.vmem [#allocation2], %s250
        %p252 = pneg %p44
        %p253 = pneg %p41
        %p254 = pneg %p65
        %p255 = pneg %p62
        %p256 = pneg %p86
        %p257 = pneg %p83
        %p258 = pneg %p107
        %p259 = pneg %p104
        %p260 = pneg %p128
        %p261 = pneg %p125
        %p262 = pneg %p154
        %p263 = pneg %p151
        %s264 = sand.u32 %s141, 1
        %s265 = scalar_lea.sflag [#allocation4], %s264
        %s266 = sand.u32 %s141, 1
        %s267 = smul.addr %s266, 8
        %s268 = scalar_lea.vmem [#allocation8], %s267
        %v269 = vld [vmem:[%s234] sm:$0xff]
        %v270 = vld [vmem:[#allocation5] sm:$0xff]
        %v271 = vld [vmem:[#allocation5 + $0x8] sm:$0xff]
        %v272 = vld [vmem:[#allocation5 + $0x10] sm:$0xff]
        %v273 = vld [vmem:[#allocation5 + $0x18] sm:$0xff]
        %v274 = vld [vmem:[#allocation5 + $0x20] sm:$0xff]
        %v275 = vld [vmem:[#allocation5 + $0x28] sm:$0xff]
        %v276 = vld [vmem:[#allocation5 + $0x30] sm:$0xff]
        %v277 = vld [vmem:[#allocation5 + $0x38] sm:$0xff]
        %v278 = vld [vmem:[#allocation5 + $0x40] sm:$0xff]
        %v279 = vld [vmem:[#allocation5 + $0x48] sm:$0xff]
        %v280 = vld [vmem:[#allocation5 + $0x50] sm:$0xff]
        %v281 = vld [vmem:[#allocation5 + $0x58] sm:$0xff]
        %v282 = vld [vmem:[#allocation5 + $0x60] sm:$0xff]
        %v283 = vld [vmem:[#allocation5 + $0x68] sm:$0xff]
        %v284 = vld [vmem:[#allocation5 + $0x70] sm:$0xff]
        %v285 = vld [vmem:[#allocation5 + $0x78] sm:$0xff]
        %v286 = vld [vmem:[%s2] sm:$0x1]
        %v288 = vlaneseq
        %v289 = vshrl.u32 %v288, 7
        %v290 = vsub.s32 0, %v289
        %v291 = vrot.slane %v286, %v290
        %293 = vmatprep.subr.mxu0 0.0
        %294 = vmatpush1.msra.mxu0 %v270
        %295 = vmatprep.subr.mxu0 0.0
        %296 = vmatpush1.msra.mxu0 %v271
        %297 = vmatprep.subr.mxu0 0.0
        %298 = vmatpush1.msra.mxu0 %v272
        %299 = vmatprep.subr.mxu0 0.0
        %300 = vmatpush1.msra.mxu0 %v273
        %301 = vmatprep.subr.mxu0 0.0
        %302 = vmatpush1.msra.mxu0 %v274
        %303 = vmatprep.subr.mxu0 0.0
        %304 = vmatpush1.msra.mxu0 %v275
        %305 = vmatprep.subr.mxu0 0.0
        %306 = vmatpush1.msra.mxu0 %v276
        %307 = vmatprep.subr.mxu0 0.0
        %308 = vmatpush1.msra.mxu0 %v277
        %309 = vmatprep.subr.mxu0 0.0
        %310 = vmatpush1.msra.mxu0 %v278
        %311 = vmatprep.subr.mxu0 0.0
        %312 = vmatpush1.msra.mxu0 %v279
        %313 = vmatprep.subr.mxu0 0.0
        %314 = vmatpush1.msra.mxu0 %v280
        %315 = vmatprep.subr.mxu0 0.0
        %316 = vmatpush1.msra.mxu0 %v281
        %317 = vmatprep.subr.mxu0 0.0
        %318 = vmatpush1.msra.mxu0 %v282
        %319 = vmatprep.subr.mxu0 0.0
        %320 = vmatpush1.msra.mxu0 %v283
        %321 = vmatprep.subr.mxu0 0.0
        %322 = vmatpush1.msra.mxu0 %v284
        %323 = vmatprep.subr.mxu0 0.0
        %324 = vmatpush1.msra.mxu0 %v285
        %325 = vmatprep.subr.mxu0 0.0
        %326 = vmatpush1.msra.mxu0 0.0
        %327 = vmatprep.subr.mxu0 0.0
        %328 = vmatpush1.msra.mxu0 0.0
        %329 = vmatprep.subr.mxu0 0.0
        %330 = vmatpush1.msra.mxu0 0.0
        %331 = vmatprep.subr.mxu0 0.0
        %332 = vmatpush1.msra.mxu0 0.0
        %333 = vmatprep.subr.mxu0 0.0
        %334 = vmatpush1.msra.mxu0 0.0
        %335 = vmatprep.subr.mxu0 0.0
        %336 = vmatpush1.msra.mxu0 0.0
        %337 = vmatprep.subr.mxu0 0.0
        %338 = vmatpush1.msra.mxu0 0.0
        %339 = vmatprep.subr.mxu0 0.0
        %340 = vmatpush1.msra.mxu0 0.0
        %341 = vmatprep.subr.mxu0 0.0
        %342 = vmatpush1.msra.mxu0 0.0
        %343 = vmatprep.subr.mxu0 0.0
        %344 = vmatpush1.msra.mxu0 0.0
        %345 = vmatprep.subr.mxu0 0.0
        %346 = vmatpush1.msra.mxu0 0.0
        %347 = vmatprep.subr.mxu0 0.0
        %348 = vmatpush1.msra.mxu0 0.0
        %349 = vmatprep.subr.mxu0 0.0
        %350 = vmatpush1.msra.mxu0 0.0
        %351 = vmatprep.subr.mxu0 0.0
        %352 = vmatpush1.msra.mxu0 0.0
        %353 = vmatprep.subr.mxu0 0.0
        %354 = vmatpush1.msra.mxu0 0.0
        %355 = vmatprep.subr.mxu0 0.0
        %356 = vmatpush1.msra.mxu0 0.0
        %357 = vmatprep.mubr.f32.mxu0 0.0
        %358 = vmatmul.mubr.f32.gmra.mrb[0].mxu0 %v269
        %v359 = vpop.f32.mrb[0].mxu0
        %v360 = vadd.f32 %v291, %v359
        %v361 = vpop.f32.mrb[0].mxu0
        %362 = vdwg.mxu0
        %v363 = vmul.f32 %v360, 0.5
        %v364 = vtanh.pop %v363
        %v365 = vmul.f32 %v364, 0.5
        %v366 = vadd.f32 %v365, 0.5
        %v367 = vld [vmem:[#allocation7] sm:$0xff]
        %v368 = vld [vmem:[#allocation7 + $0x8] sm:$0xff]
        %v369 = vld [vmem:[#allocation7 + $0x10] sm:$0xff]
        %v370 = vld [vmem:[#allocation7 + $0x18] sm:$0xff]
        %v371 = vld [vmem:[#allocation7 + $0x20] sm:$0xff]
        %v372 = vld [vmem:[#allocation7 + $0x28] sm:$0xff]
        %v373 = vld [vmem:[#allocation7 + $0x30] sm:$0xff]
        %v374 = vld [vmem:[#allocation7 + $0x38] sm:$0xff]
        %v375 = vld [vmem:[#allocation7 + $0x40] sm:$0xff]
        %v376 = vld [vmem:[#allocation7 + $0x48] sm:$0xff]
        %v377 = vld [vmem:[#allocation7 + $0x50] sm:$0xff]
        %v378 = vld [vmem:[#allocation7 + $0x58] sm:$0xff]
        %v379 = vld [vmem:[#allocation7 + $0x60] sm:$0xff]
        %v380 = vld [vmem:[#allocation7 + $0x68] sm:$0xff]
        %v381 = vld [vmem:[#allocation7 + $0x70] sm:$0xff]
        %v382 = vld [vmem:[#allocation7 + $0x78] sm:$0xff]
        %v383 = vld [vmem:[%s4] sm:$0x1]
        %v385 = vlaneseq
        %v386 = vshrl.u32 %v385, 7
        %v387 = vsub.s32 0, %v386
        %v388 = vrot.slane %v383, %v387
        %390 = vmatprep.subr.mxu0 0.0
        %391 = vmatpush1.msra.mxu0 %v367
        %392 = vmatprep.subr.mxu0 0.0
        %393 = vmatpush1.msra.mxu0 %v368
        %394 = vmatprep.subr.mxu0 0.0
        %395 = vmatpush1.msra.mxu0 %v369
        %396 = vmatprep.subr.mxu0 0.0
        %397 = vmatpush1.msra.mxu0 %v370
        %398 = vmatprep.subr.mxu0 0.0
        %399 = vmatpush1.msra.mxu0 %v371
        %400 = vmatprep.subr.mxu0 0.0
        %401 = vmatpush1.msra.mxu0 %v372
        %402 = vmatprep.subr.mxu0 0.0
        %403 = vmatpush1.msra.mxu0 %v373
        %404 = vmatprep.subr.mxu0 0.0
        %405 = vmatpush1.msra.mxu0 %v374
        %406 = vmatprep.subr.mxu0 0.0
        %407 = vmatpush1.msra.mxu0 %v375
        %408 = vmatprep.subr.mxu0 0.0
        %409 = vmatpush1.msra.mxu0 %v376
        %410 = vmatprep.subr.mxu0 0.0
        %411 = vmatpush1.msra.mxu0 %v377
        %412 = vmatprep.subr.mxu0 0.0
        %413 = vmatpush1.msra.mxu0 %v378
        %414 = vmatprep.subr.mxu0 0.0
        %415 = vmatpush1.msra.mxu0 %v379
        %416 = vmatprep.subr.mxu0 0.0
        %417 = vmatpush1.msra.mxu0 %v380
        %418 = vmatprep.subr.mxu0 0.0
        %419 = vmatpush1.msra.mxu0 %v381
        %420 = vmatprep.subr.mxu0 0.0
        %421 = vmatpush1.msra.mxu0 %v382
        %422 = vmatprep.subr.mxu0 0.0
        %423 = vmatpush1.msra.mxu0 0.0
        %424 = vmatprep.subr.mxu0 0.0
        %425 = vmatpush1.msra.mxu0 0.0
        %426 = vmatprep.subr.mxu0 0.0
        %427 = vmatpush1.msra.mxu0 0.0
        %428 = vmatprep.subr.mxu0 0.0
        %429 = vmatpush1.msra.mxu0 0.0
        %430 = vmatprep.subr.mxu0 0.0
        %431 = vmatpush1.msra.mxu0 0.0
        %432 = vmatprep.subr.mxu0 0.0
        %433 = vmatpush1.msra.mxu0 0.0
        %434 = vmatprep.subr.mxu0 0.0
        %435 = vmatpush1.msra.mxu0 0.0
        %436 = vmatprep.subr.mxu0 0.0
        %437 = vmatpush1.msra.mxu0 0.0
        %438 = vmatprep.subr.mxu0 0.0
        %439 = vmatpush1.msra.mxu0 0.0
        %440 = vmatprep.subr.mxu0 0.0
        %441 = vmatpush1.msra.mxu0 0.0
        %442 = vmatprep.subr.mxu0 0.0
        %443 = vmatpush1.msra.mxu0 0.0
        %444 = vmatprep.subr.mxu0 0.0
        %445 = vmatpush1.msra.mxu0 0.0
        %446 = vmatprep.subr.mxu0 0.0
        %447 = vmatpush1.msra.mxu0 0.0
        %448 = vmatprep.subr.mxu0 0.0
        %449 = vmatpush1.msra.mxu0 0.0
        %450 = vmatprep.subr.mxu0 0.0
        %451 = vmatpush1.msra.mxu0 0.0
        %452 = vmatprep.subr.mxu0 0.0
        %453 = vmatpush1.msra.mxu0 0.0
        %454 = vmatprep.mubr.f32.mxu0 0.0
        %455 = vmatmul.mubr.f32.gmra.mrb[0].mxu0 %v366
        %v456 = vpop.f32.mrb[0].mxu0
        %v457 = vadd.f32 %v388, %v456
        %v458 = vpop.f32.mrb[0].mxu0
        %459 = vdwg.mxu0
        %v460 = vmul.f32 %v457, 0.5
        %v461 = vtanh.pop %v460
        %v462 = vmul.f32 %v461, 0.5
        %v463 = vadd.f32 %v462, 0.5
        %464 = vst [vmem:[%s268] sm:$0xff] %v463
        %s465 = sand.u32 %s141, 1
        %s466 = scalar_lea.sflag [#allocation4], %s465
        %s467 = sand.u32 %s141, 1
        %s468 = smul.addr %s467, 8
        %s469 = scalar_lea.vmem [#allocation8], %s468
        // Predicated region
        $region53: #{tpu_custom_call.1} parent=39 // pred_check
          %p470 = pneg %p151
        $region54: #{tpu_custom_call.1} parent=39 // pred_check_branch
          %472 = sbr.rel (%p470) target = $region56
        $region55: #{tpu_custom_call.1} parent=39 // pred_region
          %s474 = ssub.s32 128, 128
          %475 = vsyncadd %s466, %s474
          %s476 = smul.addr %s23, 128
          %s477 = scalar_lea.hbm %s5, %s476
          %s479 = sshll.u32 %s469, 4
          %s480 = int_to_ptr.vmem [resolvable:$true] %s479
          %482 = dma.vmem_to_hbm [thread:$0]  %s480, 128, %s477, %s466
        $region56: #{tpu_custom_call.1} parent=39 // pred_fallthru
          _
      $region40: #{tpu_custom_call.1} parent=5 // pred_fallthru
        _
      %p483 = scmp.le.s32.totalorder 2, %s18
      // Predicated region
      $region57: #{tpu_custom_call.1} parent=5 // pred_check
        %p484 = pneg %p483
      $region58: #{tpu_custom_call.1} parent=5 // pred_check_branch
        %486 = sbr.rel (%p484) target = $region60
      $region59: #{tpu_custom_call.1} parent=5 // pred_region
        %s487 = ssub.s32 %s18, 2
        // Predicated region
        $region61: #{tpu_custom_call.1} parent=59 // pred_check
          %p488 = pneg %p157
        $region62: #{tpu_custom_call.1} parent=59 // pred_check_branch
          %490 = sbr.rel (%p488) target = $region64
        $region63: #{tpu_custom_call.1} parent=59 // pred_region
          %s491 = sand.u32 %s142, 1
          %s492 = scalar_lea.sflag [#allocation4], %s491
          %s493 = sand.u32 %s142, 1
          %s494 = smul.addr %s493, 8
          %s495 = scalar_lea.vmem [#allocation8], %s494
          %496 = dma.done %s492, 128
        $region64: #{tpu_custom_call.1} parent=59 // pred_fallthru
          _
      $region60: #{tpu_custom_call.1} parent=5 // pred_fallthru
        _
    $region6: #{tpu_custom_call.1} parent=1 // loop_footer
      %s22 = sadd.s32 1, %s18
    $region7: #{tpu_custom_call.1} parent=1 // loop_footer_branch
      %17 = sbr.rel target = $region3
    $region8: #{tpu_custom_call.1} parent=1 // loop_exit
      _
    %497 = vsyncpa [#allocation3], 1
    %s498 = scalar_lea.sflag [#allocation3], 1
    %499 = vsyncpa %s498, 1
    %500 = vsyncpa [#allocation6], 1
    %501 = vsyncpa [#allocation4], 1
    %s502 = scalar_lea.sflag [#allocation4], 1
    %503 = vsyncpa %s502, 1

</llo_original>
